<compile_context>
chip_gen: v5e
topology: v5e:2x2
jax: 0.10.0
libtpu: 0.0.40
codegen_flags: <defaults>
</compile_context>

<pallas_src>
import jax
import jax.numpy as jnp
from jax.experimental import pallas as pl
from jax.experimental.pallas import tpu as pltpu

HIDDEN = 16                      # SAGEConv out_channels
VMEM_LIMIT = 32 * 1024 * 1024    # raise v5e's 16 MiB scoped default; safe on v7x (64 MiB phys)


def _round_up(x, m):
    return (x + m - 1) // m * m


def _pad_rows(x, n_rows):
    return jnp.pad(x, ((0, n_rows - x.shape[0]), (0, 0)))


# -----------------------------------------------------------------------------
# SAGEConv kernel: tiled over (dst rows) x (src-node reduction)
# -----------------------------------------------------------------------------
def _sage_kernel(a_ref, xs_ref, wl_ref, xd_ref, wr_ref, b_ref, o_ref, acc_ref):
    k = pl.program_id(1)

    @pl.when(k == 0)
    def _():
        acc_ref[...] = jnp.zeros_like(acc_ref)

    # Reassociation: p_src = x_src_tile @ W_l (tiny), then A_tile @ p_src contracts
    # against HIDDEN instead of F_src -> far fewer FLOPs / smaller intermediates.
    p_src = jnp.dot(xs_ref[...], wl_ref[...], preferred_element_type=jnp.float32)
    acc_ref[...] += jnp.dot(a_ref[...], p_src, preferred_element_type=jnp.float32)

    # Finalize once per dst tile: root-weight term + bias, then store.
    @pl.when(k == pl.num_programs(1) - 1)
    def _():
        out = acc_ref[...]
        out = out + jnp.dot(xd_ref[...], wr_ref[...], preferred_element_type=jnp.float32)
        out = out + b_ref[...]
        o_ref[...] = out.astype(o_ref.dtype)


def sage_conv_pallas(a_norm, x_src, x_dst, w_l, w_r, b, tile_m, tile_k):
    """a_norm: (N_dst_pad, N_src_pad) row-normalized dense adjacency (already padded)."""
    n_dst_p, n_src_p = a_norm.shape
    f_src = x_src.shape[1]
    f_dst = x_dst.shape[1]
    grid = (n_dst_p // tile_m, n_src_p // tile_k)
    return pl.pallas_call(
        _sage_kernel,
        out_shape=jax.ShapeDtypeStruct((n_dst_p, HIDDEN), jnp.float32),
        grid_spec=pltpu.PrefetchScalarGridSpec(
            num_scalar_prefetch=0,
            grid=grid,
            in_specs=[
                pl.BlockSpec((tile_m, tile_k), lambda m, k: (m, k)),   # A_norm tile
                pl.BlockSpec((tile_k, f_src), lambda m, k: (k, 0)),    # x_src K-tile
                pl.BlockSpec((f_src, HIDDEN), lambda m, k: (0, 0)),    # W_l
                pl.BlockSpec((tile_m, f_dst), lambda m, k: (m, 0)),    # x_dst M-tile
                pl.BlockSpec((f_dst, HIDDEN), lambda m, k: (0, 0)),    # W_r
                pl.BlockSpec((1, HIDDEN), lambda m, k: (0, 0)),        # bias
            ],
            out_specs=pl.BlockSpec((tile_m, HIDDEN), lambda m, k: (m, 0)),
            scratch_shapes=[pltpu.VMEM((tile_m, HIDDEN), jnp.float32)],
        ),
        compiler_params=pltpu.CompilerParams(
            dimension_semantics=("parallel", "arbitrary"),
            vmem_limit_bytes=VMEM_LIMIT,
        ),
    )(a_norm, x_src, w_l, x_dst, w_r, b)


# -----------------------------------------------------------------------------
# InnerProductDecoder kernel (lane-dense output)
# -----------------------------------------------------------------------------
def _decoder_kernel(zu_ref, zv_ref, o_ref):
    # inputs are (HIDDEN, TILE_E): reduce over sublanes -> lane-dense (1, TILE_E)
    s = jnp.sum(zu_ref[...] * zv_ref[...], axis=0, keepdims=True)
    o_ref[...] = jax.nn.sigmoid(s).astype(o_ref.dtype)


def inner_product_decoder_pallas(z, edge_index, tile_e=512):
    n_edges = edge_index.shape[1]
    e_pad = _round_up(max(n_edges, 1), 128)
    tile_e = min(tile_e, e_pad)
    e_pad = _round_up(e_pad, tile_e)
    u = jnp.pad(edge_index[0], (0, e_pad - n_edges))   # pad with index 0 (valid row)
    v = jnp.pad(edge_index[1], (0, e_pad - n_edges))
    # endpoint gather + transpose in XLA glue; kernel sees lane-dense (HIDDEN, E_pad)
    zu_t = z[u].T
    zv_t = z[v].T
    out = pl.pallas_call(
        _decoder_kernel,
        out_shape=jax.ShapeDtypeStruct((1, e_pad), jnp.float32),
        grid=(e_pad // tile_e,),
        in_specs=[pl.BlockSpec((HIDDEN, tile_e), lambda i: (0, i)),
                  pl.BlockSpec((HIDDEN, tile_e), lambda i: (0, i))],
        out_specs=pl.BlockSpec((1, tile_e), lambda i: (0, i)),
        compiler_params=pltpu.CompilerParams(
            dimension_semantics=("parallel",),
            vmem_limit_bytes=VMEM_LIMIT,
        ),
    )(zu_t, zv_t)
    return out[0, :n_edges]


# -----------------------------------------------------------------------------
# Glue (plain JAX): adjacency construction, padding, parameter setup
# -----------------------------------------------------------------------------
def build_norm_adj(edge_index, n_dst_pad, n_src_pad):
    """Dense row-normalized adjacency A[j, i] so A @ x_src == scatter_mean (padded)."""
    src, dst = edge_index[0], edge_index[1]
    a = jnp.zeros((n_dst_pad, n_src_pad), jnp.float32).at[dst, src].add(1.0)
    deg = jnp.clip(jnp.sum(a, axis=1, keepdims=True), 1.0, None)
    return a / deg


def init_linear(key, fan_in, fan_out):
    bound = 1.0 / jnp.sqrt(jnp.float32(fan_in))
    return jax.random.uniform(key, (fan_in, fan_out), jnp.float32, -bound, bound)


def init_params(key, f_account, f_transaction):
    ks = jax.random.split(key, 6)
    return {
        # ('account','initiates','transaction'): src=account, dst=transaction
        "at": {
            "w_l": init_linear(ks[0], f_account, HIDDEN),
            "w_r": init_linear(ks[1], f_transaction, HIDDEN),
            "b": jax.random.uniform(ks[2], (1, HIDDEN), jnp.float32, -0.1, 0.1),
        },
        # ('transaction','receives','account'): src=transaction, dst=account
        "ta": {
            "w_l": init_linear(ks[3], f_transaction, HIDDEN),
            "w_r": init_linear(ks[4], f_account, HIDDEN),
            "b": jax.random.uniform(ks[5], (1, HIDDEN), jnp.float32, -0.1, 0.1),
        },
    }


def hetero_graph_autoencoder(params, x_dict, edge_index_dict, edge_index,
                             tile_m=256, tile_k=512):
    x_acct = x_dict["account"]
    x_trans = x_dict["transaction"]
    n_acct, n_trans = x_acct.shape[0], x_trans.shape[0]

    ei_at = edge_index_dict[("account", "initiates", "transaction")]
    ei_ta = edge_index_dict[("transaction", "receives", "account")]

    # relation ('account','initiates','transaction'): src=account, dst=transaction
    tm1 = min(tile_m, _round_up(n_trans, 8))
    tk1 = min(tile_k, _round_up(n_acct, 128))
    n_trans_m = _round_up(n_trans, tm1)
    n_acct_k = _round_up(n_acct, tk1)
    a1 = build_norm_adj(ei_at, n_trans_m, n_acct_k)
    z_trans = sage_conv_pallas(
        a1, _pad_rows(x_acct, n_acct_k), _pad_rows(x_trans, n_trans_m),
        params["at"]["w_l"], params["at"]["w_r"], params["at"]["b"],
        tm1, tk1)[:n_trans]

    # relation ('transaction','receives','account'): src=transaction, dst=account
    tm2 = min(tile_m, _round_up(n_acct, 8))
    tk2 = min(tile_k, _round_up(n_trans, 128))
    n_acct_m = _round_up(n_acct, tm2)
    n_trans_k = _round_up(n_trans, tk2)
    a2 = build_norm_adj(ei_ta, n_acct_m, n_trans_k)
    z_acct = sage_conv_pallas(
        a2, _pad_rows(x_trans, n_trans_k), _pad_rows(x_acct, n_acct_m),
        params["ta"]["w_l"], params["ta"]["w_r"], params["ta"]["b"],
        tm2, tk2)[:n_acct]

    embeddings = {"account": z_acct, "transaction": z_trans}
    assert "account" in embeddings and "transaction" in embeddings, \
        "Missing embeddings for required node types"

    return inner_product_decoder_pallas(embeddings["account"], edge_index)


def reference_forward(params, x_dict, edge_index_dict, edge_index):
    """Pure-JAX reference for correctness checking."""
    x_acct = x_dict["account"]
    x_trans = x_dict["transaction"]
    n_acct, n_trans = x_acct.shape[0], x_trans.shape[0]

    def adj(ei, n_dst, n_src):
        a = jnp.zeros((n_dst, n_src), jnp.float32).at[ei[1], ei[0]].add(1.0)
        deg = jnp.clip(jnp.sum(a, axis=1, keepdims=True), 1.0, None)
        return a / deg

    a1 = adj(edge_index_dict[("account", "initiates", "transaction")], n_trans, n_acct)
    a2 = adj(edge_index_dict[("transaction", "receives", "account")], n_acct, n_trans)
    z_trans = (a1 @ x_acct) @ params["at"]["w_l"] + x_trans @ params["at"]["w_r"] + params["at"]["b"]
    z_acct = (a2 @ x_trans) @ params["ta"]["w_l"] + x_acct @ params["ta"]["w_r"] + params["ta"]["b"]
    del z_trans
    val = jnp.sum(z_acct[edge_index[0]] * z_acct[edge_index[1]], axis=1)
    return jax.nn.sigmoid(val)


# -----------------------------------------------------------------------------
# main
# -----------------------------------------------------------------------------
if __name__ == "__main__":
    key = jax.random.PRNGKey(0)
    k_feat_a, k_feat_t, k_e1, k_e2, k_e3, k_params = jax.random.split(key, 6)

    n_account, n_transaction = 8, 8
    f_account, f_transaction = 8, 4
    n_edges_rel, n_edges_dec = 16, 10

    x_dict = {
        "account": jax.random.normal(k_feat_a, (n_account, f_account), jnp.float32),
        "transaction": jax.random.normal(k_feat_t, (n_transaction, f_transaction), jnp.float32),
    }
    edge_index_dict = {
        ("account", "initiates", "transaction"): jnp.stack([
            jax.random.randint(k_e1, (n_edges_rel,), 0, n_account),
            jax.random.randint(jax.random.fold_in(k_e1, 1), (n_edges_rel,), 0, n_transaction),
        ]),
        ("transaction", "receives", "account"): jnp.stack([
            jax.random.randint(k_e2, (n_edges_rel,), 0, n_transaction),
            jax.random.randint(jax.random.fold_in(k_e2, 1), (n_edges_rel,), 0, n_account),
        ]),
    }
    edge_index = jnp.stack([
        jax.random.randint(k_e3, (n_edges_dec,), 0, n_account),
        jax.random.randint(jax.random.fold_in(k_e3, 1), (n_edges_dec,), 0, n_account),
    ])

    params = init_params(k_params, f_account, f_transaction)

    out = hetero_graph_autoencoder(params, x_dict, edge_index_dict, edge_index)
    out = jax.block_until_ready(out)

    ref = reference_forward(params, x_dict, edge_index_dict, edge_index)
    assert out.shape == (n_edges_dec,), out.shape
    assert jnp.allclose(out, ref, atol=1e-4, rtol=1e-4), (out, ref)

    print("KERNEL_OK")
</pallas_src>

<mosaic_0001>
module attributes {stable_mosaic.version = 11 : i64} {
  func.func @_sage_kernel(%arg0: i32, %arg1: i32, %arg2: memref<8x128xf32, #tpu.memory_space<vmem>>, %arg3: memref<128x8xf32, #tpu.memory_space<vmem>>, %arg4: memref<8x16xf32, #tpu.memory_space<vmem>>, %arg5: memref<8x4xf32, #tpu.memory_space<vmem>>, %arg6: memref<4x16xf32, #tpu.memory_space<vmem>>, %arg7: memref<1x16xf32, #tpu.memory_space<vmem>>, %arg8: memref<8x16xf32, #tpu.memory_space<vmem>>, %arg9: memref<8x16xf32, #tpu.memory_space<vmem>>) attributes {dimension_semantics = [#tpu.dimension_semantics<parallel>, #tpu.dimension_semantics<arbitrary>], iteration_bounds = array<i64: 1, 1>, scalar_prefetch = 0 : i64, scratch_operands = 1 : i64, tpu.core_type = #tpu.core_type<tc>, window_params = [{transform_indices = @transform_0, window_bounds = array<i64: 8, 128>}, {transform_indices = @transform_1, window_bounds = array<i64: 128, 8>}, {pipeline_mode = #tpu.pipeline_mode<synchronous>, transform_indices = @transform_2, window_bounds = array<i64: 8, 16>}, {transform_indices = @transform_3, window_bounds = array<i64: 8, 4>}, {pipeline_mode = #tpu.pipeline_mode<synchronous>, transform_indices = @transform_4, window_bounds = array<i64: 4, 16>}, {pipeline_mode = #tpu.pipeline_mode<synchronous>, transform_indices = @transform_5, window_bounds = array<i64: 1, 16>}, {transform_indices = @transform_6, window_bounds = array<i64: 8, 16>}]} {
    %c0_i32 = arith.constant 0 : i32
    %0 = arith.cmpi eq, %arg1, %c0_i32 : i32
    %1 = arith.extui %0 : i1 to i32
    %c0_i32_0 = arith.constant 0 : i32
    %2 = arith.cmpi ne, %1, %c0_i32_0 : i32
    scf.if %2 {
      %cst_13 = arith.constant 0.000000e+00 : f32
      %14 = vector.broadcast %cst_13 : f32 to vector<8x16xf32>
      %c0_14 = arith.constant 0 : index
      %c0_15 = arith.constant 0 : index
      %15 = vector.load %arg9[%c0_14, %c0_15] : memref<8x16xf32, #tpu.memory_space<vmem>>, vector<8x16xf32>
      tpu.vector_store %arg9[%c0_14, %c0_15], %14 {strides = array<i32>} : memref<8x16xf32, #tpu.memory_space<vmem>>, vector<8x16xf32>,
    } else {
    }
    %c0 = arith.constant 0 : index
    %c0_1 = arith.constant 0 : index
    %3 = vector.load %arg3[%c0, %c0_1] : memref<128x8xf32, #tpu.memory_space<vmem>>, vector<128x8xf32>
    %c0_2 = arith.constant 0 : index
    %c0_3 = arith.constant 0 : index
    %4 = vector.load %arg4[%c0_2, %c0_3] : memref<8x16xf32, #tpu.memory_space<vmem>>, vector<8x16xf32>
    %cst = arith.constant dense<0.000000e+00> : vector<128x16xf32>
    %5 = tpu.matmul %3, %4, %cst {dimension_numbers = #tpu.dot_dimension_numbers<[1], [0], [0], [1], [0, 0, 1, 1], [], []>} : vector<128x8xf32>, vector<8x16xf32>, vector<128x16xf32> -> vector<128x16xf32>
    %c0_4 = arith.constant 0 : index
    %c0_5 = arith.constant 0 : index
    %6 = vector.load %arg9[%c0_4, %c0_5] : memref<8x16xf32, #tpu.memory_space<vmem>>, vector<8x16xf32>
    %c0_6 = arith.constant 0 : index
    %c0_7 = arith.constant 0 : index
    %7 = vector.load %arg2[%c0_6, %c0_7] : memref<8x128xf32, #tpu.memory_space<vmem>>, vector<8x128xf32>
    %cst_8 = arith.constant dense<0.000000e+00> : vector<8x16xf32>
    %8 = tpu.matmul %7, %5, %cst_8 {dimension_numbers = #tpu.dot_dimension_numbers<[1], [0], [0], [1], [0, 0, 1, 1], [], []>} : vector<8x128xf32>, vector<128x16xf32>, vector<8x16xf32> -> vector<8x16xf32>
    %9 = arith.addf %6, %8 : vector<8x16xf32>
    %c0_9 = arith.constant 0 : index
    %c0_10 = arith.constant 0 : index
    %10 = vector.load %arg9[%c0_9, %c0_10] : memref<8x16xf32, #tpu.memory_space<vmem>>, vector<8x16xf32>
    tpu.vector_store %arg9[%c0_9, %c0_10], %9 {strides = array<i32>} : memref<8x16xf32, #tpu.memory_space<vmem>>, vector<8x16xf32>,
    %c0_i32_11 = arith.constant 0 : i32
    %11 = arith.cmpi eq, %arg1, %c0_i32_11 : i32
    %12 = arith.extui %11 : i1 to i32
    %c0_i32_12 = arith.constant 0 : i32
    %13 = arith.cmpi ne, %12, %c0_i32_12 : i32
    scf.if %13 {
      %c0_13 = arith.constant 0 : index
      %c0_14 = arith.constant 0 : index
      %14 = vector.load %arg9[%c0_13, %c0_14] : memref<8x16xf32, #tpu.memory_space<vmem>>, vector<8x16xf32>
      %c0_15 = arith.constant 0 : index
      %c0_16 = arith.constant 0 : index
      %15 = vector.load %arg5[%c0_15, %c0_16] : memref<8x4xf32, #tpu.memory_space<vmem>>, vector<8x4xf32>
      %c0_17 = arith.constant 0 : index
      %c0_18 = arith.constant 0 : index
      %16 = vector.load %arg6[%c0_17, %c0_18] : memref<4x16xf32, #tpu.memory_space<vmem>>, vector<4x16xf32>
      %cst_19 = arith.constant dense<0.000000e+00> : vector<8x16xf32>
      %17 = tpu.matmul %15, %16, %cst_19 {dimension_numbers = #tpu.dot_dimension_numbers<[1], [0], [0], [1], [0, 0, 1, 1], [], []>} : vector<8x4xf32>, vector<4x16xf32>, vector<8x16xf32> -> vector<8x16xf32>
      %18 = arith.addf %14, %17 : vector<8x16xf32>
      %c0_20 = arith.constant 0 : index
      %c0_21 = arith.constant 0 : index
      %19 = vector.load %arg7[%c0_20, %c0_21] : memref<1x16xf32, #tpu.memory_space<vmem>>, vector<1x16xf32>
      %20 = vector.broadcast %19 : vector<1x16xf32> to vector<8x16xf32>
      %21 = arith.addf %18, %20 : vector<8x16xf32>
      %c0_22 = arith.constant 0 : index
      %c0_23 = arith.constant 0 : index
      %22 = vector.load %arg8[%c0_22, %c0_23] : memref<8x16xf32, #tpu.memory_space<vmem>>, vector<8x16xf32>
      tpu.vector_store %arg8[%c0_22, %c0_23], %21 {strides = array<i32>} : memref<8x16xf32, #tpu.memory_space<vmem>>, vector<8x16xf32>,
    } else {
    }
    return
  }
  func.func @transform_0(%arg0: i32, %arg1: i32) -> (i32, i32) {
    %c0_i32 = arith.constant 0 : i32
    return %arg0, %arg1 : i32, i32
  }
  func.func @transform_1(%arg0: i32, %arg1: i32) -> (i32, i32) {
    %c0_i32 = arith.constant 0 : i32
    %c0_i32_0 = arith.constant 0 : i32
    return %arg1, %c0_i32 : i32, i32
  }
  func.func @transform_2(%arg0: i32, %arg1: i32) -> (i32, i32) {
    %c0_i32 = arith.constant 0 : i32
    %c0_i32_0 = arith.constant 0 : i32
    %c0_i32_1 = arith.constant 0 : i32
    return %c0_i32, %c0_i32_0 : i32, i32
  }
  func.func @transform_3(%arg0: i32, %arg1: i32) -> (i32, i32) {
    %c0_i32 = arith.constant 0 : i32
    %c0_i32_0 = arith.constant 0 : i32
    return %arg0, %c0_i32 : i32, i32
  }
  func.func @transform_4(%arg0: i32, %arg1: i32) -> (i32, i32) {
    %c0_i32 = arith.constant 0 : i32
    %c0_i32_0 = arith.constant 0 : i32
    %c0_i32_1 = arith.constant 0 : i32
    return %c0_i32, %c0_i32_0 : i32, i32
  }
  func.func @transform_5(%arg0: i32, %arg1: i32) -> (i32, i32) {
    %c0_i32 = arith.constant 0 : i32
    %c0_i32_0 = arith.constant 0 : i32
    %c0_i32_1 = arith.constant 0 : i32
    return %c0_i32, %c0_i32_0 : i32, i32
  }
  func.func @transform_6(%arg0: i32, %arg1: i32) -> (i32, i32) {
    %c0_i32 = arith.constant 0 : i32
    %c0_i32_0 = arith.constant 0 : i32
    return %arg0, %c0_i32 : i32, i32
  }
}

</mosaic_0001>

<llo_original>
// kernel: tpu_custom_call.1
$region0: #{tpu_custom_call.1}
  #allocation0 [shape = 'u32[]', space=smem, size = 0x4, offset = 0x4, fixed_abs, tag = 'smem constant byte address 0x4 - core index']
  #allocation1 [shape = 'u32[72,128]{1,0:T(1,128)}', space=vmem, size = 0x9000, scoped, tag = 'internal scratch']
  #allocation2 [shape = 'f32[8,16]{1,0:T(8,128)}', space=vmem, size = 0x1000, scoped, tag = 'scratch operand']
  %s0 = inlined_call_operand.vmem [shape: f32[8,128], index: 0, kind: input, shape index: {}]
  %s1 = inlined_call_operand.vmem [shape: f32[128,8], index: 1, kind: input, shape index: {}]
  %s2 = inlined_call_operand.vmem [shape: f32[8,16], index: 2, kind: input, shape index: {}]
  %s3 = inlined_call_operand.vmem [shape: f32[8,4], index: 3, kind: input, shape index: {}]
  %s4 = inlined_call_operand.vmem [shape: f32[4,16], index: 4, kind: input, shape index: {}]
  %s5 = inlined_call_operand.vmem [shape: f32[1,16], index: 5, kind: input, shape index: {}]
  %s6 = inlined_call_operand.hbm [shape: f32[8,16], index: 6, kind: output, shape index: {}]
  %s7 = sld [smem:[#allocation0]]
  $region42: #{tpu_custom_call.1} parent=0
    _
  %s9 = ssub.s32 1, %s7
  %s10 = scalar_select 0, %s9, %s7
  $region1: #{tpu_custom_call.1} parent=0
    #allocation3 [shape = 'u8[4096]{0}', space=vmem, size = 0x1000, scoped, tag = 'output window, operand 0, single buffered']
    #allocation4 [shape = 's32[1]{0}', space=sflag, size = 0x4, scoped, tag = 'scoped memory for tpu_custom_call.1']
    %11 = vsyncpa [#allocation4], 0
    // Predicated region
    $region2: #{tpu_custom_call.1} parent=1 // pred_check
      _
    $region3: #{tpu_custom_call.1} parent=1 // pred_check_branch
      %13 = sbr.rel (0) target = $region5
    $region4: #{tpu_custom_call.1} parent=1 // pred_region
      _
    $region5: #{tpu_custom_call.1} parent=1 // pred_fallthru
      _
    // Predicated region
    $region6: #{tpu_custom_call.1} parent=1 // pred_check
      _
    $region7: #{tpu_custom_call.1} parent=1 // pred_check_branch
      %15 = sbr.rel (0) target = $region9
    $region8: #{tpu_custom_call.1} parent=1 // pred_region
      _
    $region9: #{tpu_custom_call.1} parent=1 // pred_fallthru
      _
    // Predicated region
    $region10: #{tpu_custom_call.1} parent=1 // pred_check
      _
    $region11: #{tpu_custom_call.1} parent=1 // pred_check_branch
      %17 = sbr.rel (0) target = $region13
    $region12: #{tpu_custom_call.1} parent=1 // pred_region
      _
    $region13: #{tpu_custom_call.1} parent=1 // pred_fallthru
      _
    // Predicated region
    $region14: #{tpu_custom_call.1} parent=1 // pred_check
      _
    $region15: #{tpu_custom_call.1} parent=1 // pred_check_branch
      %19 = sbr.rel (0) target = $region17
    $region16: #{tpu_custom_call.1} parent=1 // pred_region
      _
    $region17: #{tpu_custom_call.1} parent=1 // pred_fallthru
      _
    // Predicated region
    $region18: #{tpu_custom_call.1} parent=1 // pred_check
      _
    $region19: #{tpu_custom_call.1} parent=1 // pred_check_branch
      %21 = sbr.rel (0) target = $region21
    $region20: #{tpu_custom_call.1} parent=1 // pred_region
      _
    $region21: #{tpu_custom_call.1} parent=1 // pred_fallthru
      _
    // Predicated region
    $region22: #{tpu_custom_call.1} parent=1 // pred_check
      _
    $region23: #{tpu_custom_call.1} parent=1 // pred_check_branch
      %23 = sbr.rel (0) target = $region25
    $region24: #{tpu_custom_call.1} parent=1 // pred_region
      _
    $region25: #{tpu_custom_call.1} parent=1 // pred_fallthru
      _
    %p24 = scmp.eq.s32.totalorder 0, 0
    // Predicated region
    $region26: #{tpu_custom_call.1} parent=1 // pred_check
      %p25 = pneg %p24
    $region27: #{tpu_custom_call.1} parent=1 // pred_check_branch
      %27 = sbr.rel (%p25) target = $region29
    $region28: #{tpu_custom_call.1} parent=1 // pred_region
      %vm28 = vcmask 130048
      %29 = vst.msk [vmem:[#allocation2] sm:$0xff] %vm28, 0.0
    $region29: #{tpu_custom_call.1} parent=1 // pred_fallthru
      _
    %v30 = vld [vmem:[%s1] sm:$0xff]
    %v31 = vld [vmem:[%s1 + $0x8] sm:$0xff]
    %v32 = vld [vmem:[%s1 + $0x10] sm:$0xff]
    %v33 = vld [vmem:[%s1 + $0x18] sm:$0xff]
    %v34 = vld [vmem:[%s1 + $0x20] sm:$0xff]
    %v35 = vld [vmem:[%s1 + $0x28] sm:$0xff]
    %v36 = vld [vmem:[%s1 + $0x30] sm:$0xff]
    %v37 = vld [vmem:[%s1 + $0x38] sm:$0xff]
    %v38 = vld [vmem:[%s1 + $0x40] sm:$0xff]
    %v39 = vld [vmem:[%s1 + $0x48] sm:$0xff]
    %v40 = vld [vmem:[%s1 + $0x50] sm:$0xff]
    %v41 = vld [vmem:[%s1 + $0x58] sm:$0xff]
    %v42 = vld [vmem:[%s1 + $0x60] sm:$0xff]
    %v43 = vld [vmem:[%s1 + $0x68] sm:$0xff]
    %v44 = vld [vmem:[%s1 + $0x70] sm:$0xff]
    %v45 = vld [vmem:[%s1 + $0x78] sm:$0xff]
    %v46 = vld [vmem:[%s2] sm:$0xff]
    %vm47 = vcmask 64512
    %v49 = vsel %vm47, %v30, 0
    %v52 = vsel %vm47, %v31, 0
    %v55 = vsel %vm47, %v32, 0
    %v58 = vsel %vm47, %v33, 0
    %v61 = vsel %vm47, %v34, 0
    %v64 = vsel %vm47, %v35, 0
    %v67 = vsel %vm47, %v36, 0
    %v70 = vsel %vm47, %v37, 0
    %v73 = vsel %vm47, %v38, 0
    %v76 = vsel %vm47, %v39, 0
    %v79 = vsel %vm47, %v40, 0
    %v82 = vsel %vm47, %v41, 0
    %v85 = vsel %vm47, %v42, 0
    %v88 = vsel %vm47, %v43, 0
    %v91 = vsel %vm47, %v44, 0
    %v94 = vsel %vm47, %v45, 0
    %96 = vmatpush.msra.mxu0 0.0
    %97 = vmatpush.msra.mxu0 0.0
    %98 = vmatpush.msra.mxu0 0.0
    %99 = vmatpush.msra.mxu0 0.0
    %100 = vmatpush.msra.mxu0 0.0
    %101 = vmatpush.msra.mxu0 0.0
    %102 = vmatpush.msra.mxu0 0.0
    %103 = vmatpush.msra.mxu0 0.0
    %104 = vmatpush.msra.mxu0 0.0
    %105 = vmatpush.msra.mxu0 0.0
    %106 = vmatpush.msra.mxu0 0.0
    %107 = vmatpush.msra.mxu0 0.0
    %108 = vmatpush.msra.mxu0 0.0
    %109 = vmatpush.msra.mxu0 0.0
    %110 = vmatpush.msra.mxu0 0.0
    %111 = vmatpush.msra.mxu0 %v46
    %112 = vmatmul.f32.gmra.mxu0 %v49
    %v113 = vpop.f32.mrf.mxu0
    %v114 = vadd.f32 0.0, %v113
    %115 = vmatmul.f32.gmra.mxu0 %v52
    %v116 = vpop.f32.mrf.mxu0
    %v117 = vadd.f32 0.0, %v116
    %118 = vmatmul.f32.gmra.mxu0 %v55
    %v119 = vpop.f32.mrf.mxu0
    %v120 = vadd.f32 0.0, %v119
    %121 = vmatmul.f32.gmra.mxu0 %v58
    %v122 = vpop.f32.mrf.mxu0
    %v123 = vadd.f32 0.0, %v122
    %124 = vmatmul.f32.gmra.mxu0 %v61
    %v125 = vpop.f32.mrf.mxu0
    %v126 = vadd.f32 0.0, %v125
    %127 = vmatmul.f32.gmra.mxu0 %v64
    %v128 = vpop.f32.mrf.mxu0
    %v129 = vadd.f32 0.0, %v128
    %130 = vmatmul.f32.gmra.mxu0 %v67
    %v131 = vpop.f32.mrf.mxu0
    %v132 = vadd.f32 0.0, %v131
    %133 = vmatmul.f32.gmra.mxu0 %v70
    %v134 = vpop.f32.mrf.mxu0
    %v135 = vadd.f32 0.0, %v134
    %136 = vmatmul.f32.gmra.mxu0 %v73
    %v137 = vpop.f32.mrf.mxu0
    %v138 = vadd.f32 0.0, %v137
    %139 = vmatmul.f32.gmra.mxu0 %v76
    %v140 = vpop.f32.mrf.mxu0
    %v141 = vadd.f32 0.0, %v140
    %142 = vmatmul.f32.gmra.mxu0 %v79
    %v143 = vpop.f32.mrf.mxu0
    %v144 = vadd.f32 0.0, %v143
    %145 = vmatmul.f32.gmra.mxu0 %v82
    %v146 = vpop.f32.mrf.mxu0
    %v147 = vadd.f32 0.0, %v146
    %148 = vmatmul.f32.gmra.mxu0 %v85
    %v149 = vpop.f32.mrf.mxu0
    %v150 = vadd.f32 0.0, %v149
    %151 = vmatmul.f32.gmra.mxu0 %v88
    %v152 = vpop.f32.mrf.mxu0
    %v153 = vadd.f32 0.0, %v152
    %154 = vmatmul.f32.gmra.mxu0 %v91
    %v155 = vpop.f32.mrf.mxu0
    %v156 = vadd.f32 0.0, %v155
    %157 = vmatmul.f32.gmra.mxu0 %v94
    %v158 = vpop.f32.mrf.mxu0
    %v159 = vadd.f32 0.0, %v158
    %160 = vdwg.mxu0
    %v161 = vld [vmem:[#allocation2] sm:$0xff]
    %v162 = vld [vmem:[%s0] sm:$0xff]
    %163 = vmatpush.msra.mxu0 %v159
    %164 = vmatpush.msra.mxu0 %v156
    %165 = vmatpush.msra.mxu0 %v153
    %166 = vmatpush.msra.mxu0 %v150
    %167 = vmatpush.msra.mxu0 %v147
    %168 = vmatpush.msra.mxu0 %v144
    %169 = vmatpush.msra.mxu0 %v141
    %170 = vmatpush.msra.mxu0 %v138
    %171 = vmatpush.msra.mxu0 %v135
    %172 = vmatpush.msra.mxu0 %v132
    %173 = vmatpush.msra.mxu0 %v129
    %174 = vmatpush.msra.mxu0 %v126
    %175 = vmatpush.msra.mxu0 %v123
    %176 = vmatpush.msra.mxu0 %v120
    %177 = vmatpush.msra.mxu0 %v117
    %178 = vmatpush.msra.mxu0 %v114
    %179 = vmatmul.f32.gmra.mxu0 %v162
    %v180 = vpop.f32.mrf.mxu0
    %v181 = vadd.f32 0.0, %v180
    %182 = vdwg.mxu0
    %v183 = vadd.f32 %v161, %v181
    %vm184 = vcmask 130048
    %185 = vst.msk [vmem:[#allocation2] sm:$0xff] %vm184, %v183
    // Predicated region
    $region30: #{tpu_custom_call.1} parent=1 // pred_check
      %p186 = pneg %p24
    $region31: #{tpu_custom_call.1} parent=1 // pred_check_branch
      %188 = sbr.rel (%p186) target = $region33
    $region32: #{tpu_custom_call.1} parent=1 // pred_region
      %v189 = vld [vmem:[#allocation2] sm:$0xff]
      %v190 = vld [vmem:[%s3] sm:$0xff]
      %v191 = vld [vmem:[%s4] sm:$0xf]
      %vm192 = vcmask 31744
      %v194 = vsel %vm192, %v190, 0
      %vm196 = vcmask 1043456
      %v198 = vsel %vm196, %v191, 0
      %200 = vmatpush.msra.mxu0 0.0
      %201 = vmatpush.msra.mxu0 0.0
      %202 = vmatpush.msra.mxu0 0.0
      %203 = vmatpush.msra.mxu0 0.0
      %204 = vmatpush.msra.mxu0 0.0
      %205 = vmatpush.msra.mxu0 0.0
      %206 = vmatpush.msra.mxu0 0.0
      %207 = vmatpush.msra.mxu0 0.0
      %208 = vmatpush.msra.mxu0 0.0
      %209 = vmatpush.msra.mxu0 0.0
      %210 = vmatpush.msra.mxu0 0.0
      %211 = vmatpush.msra.mxu0 0.0
      %212 = vmatpush.msra.mxu0 0.0
      %213 = vmatpush.msra.mxu0 0.0
      %214 = vmatpush.msra.mxu0 0.0
      %215 = vmatpush.msra.mxu0 %v198
      %216 = vmatmul.f32.gmra.mxu0 %v194
      %v217 = vpop.f32.mrf.mxu0
      %v218 = vadd.f32 0.0, %v217
      %219 = vdwg.mxu0
      %v220 = vadd.f32 %v189, %v218
      %v221 = vld [vmem:[%s5] sm:$0x1]
      %v223 = vperm.slane %v221, 0
      %v225 = vadd.f32 %v220, %v223
      %226 = vst.msk [vmem:[#allocation3] sm:$0xff] %vm184, %v225
    $region33: #{tpu_custom_call.1} parent=1 // pred_fallthru
      _
    // Predicated region
    $region34: #{tpu_custom_call.1} parent=1 // pred_check
      _
    $region35: #{tpu_custom_call.1} parent=1 // pred_check_branch
      %228 = sbr.rel (0) target = $region37
    $region36: #{tpu_custom_call.1} parent=1 // pred_region
      %230 = vsyncadd [#allocation4], 0
      %s232 = sshll.u32 [#allocation3], 4
      %s233 = int_to_ptr.vmem [resolvable:$true] %s232
      %s234 = sshll.u32 %s6, 4
      %s235 = int_to_ptr.hbm [resolvable:$true] %s234
      %237 = dma.vmem_to_hbm [thread:$0]  %s233, 128, %s235, [#allocation4]
    $region37: #{tpu_custom_call.1} parent=1 // pred_fallthru
      _
    // Predicated region
    $region38: #{tpu_custom_call.1} parent=1 // pred_check
      _
    $region39: #{tpu_custom_call.1} parent=1 // pred_check_branch
      %239 = sbr.rel (0) target = $region41
    $region40: #{tpu_custom_call.1} parent=1 // pred_region
      %241 = dma.done [#allocation4], 128
    $region41: #{tpu_custom_call.1} parent=1 // pred_fallthru
      _
    %242 = vsyncpa [#allocation4], 1

</llo_original>
